<compile_context>
chip_gen: v7x
topology: tpu7x:2x2x1
jax: 0.10.0
libtpu: 0.0.40
codegen_flags: <defaults>
</compile_context>

<pallas_src>
import jax
import jax.numpy as jnp
from jax import lax
from jax.experimental import pallas as pl
from jax.experimental.pallas import tpu as pltpu


def _make_kernel(C, n_rows, rows_pb, needs_row_mask, eps, max_weight,
                 n_elem, hw_total):
    eps = float(eps)
    max_weight = float(max_weight)
    n_elem = float(n_elem)        # denominator of .mean(dim=[1,2,3]) = C*H*W
    hw_total = float(hw_total)    # total_area per sample (mask has 1 channel)

    def kernel(pred_ref, tgt_ref, mask_ref, out_ref,
               acc_rice, acc_total, acc_area):
        c = pl.program_id(1)

        @pl.when(c == 0)
        def _():
            acc_rice[...] = jnp.zeros_like(acc_rice)
            acc_total[...] = jnp.zeros_like(acc_total)
            acc_area[...] = jnp.zeros_like(acc_area)

        # Widen before subtract (mirrors the f32 reference; exact for f32
        # inputs, and matches `.float()`-first semantics for bf16 inputs).
        p = pred_ref[...].astype(jnp.float32)              # (1, C, rows, 128)
        t = tgt_ref[...].astype(jnp.float32)
        abs_err = jnp.abs(p - t)
        # Reduce the small C axis first: C-1 elementwise VPU adds. The mask is
        # broadcast over C, so everything downstream runs on (rows, 128) only.
        col = jnp.sum(abs_err, axis=(0, 1))                # (rows, 128)
        m = mask_ref[...].astype(jnp.float32)[0, 0]        # (rows, 128)

        if needs_row_mask:
            # Ragged tail of the row axis: out-of-bounds rows of this block
            # hold unspecified data — zero them before they touch accumulators.
            row_idx = lax.broadcasted_iota(jnp.int32, (rows_pb, 128), 0)
            valid = (c * rows_pb + row_idx) < n_rows
            col = jnp.where(valid, col, 0.0)
            m = jnp.where(valid, m, 0.0)

        # Pure elementwise (VPU) accumulation — free filler under the DMA.
        acc_rice[...] += col * m          # masked (rice) partial sums
        acc_total[...] += col             # total partial sums
        acc_area[...] += m                # rice-area partial sums

        @pl.when(c == pl.num_programs(1) - 1)
        def _():
            # Single cross-lane reduction per quantity, once per sample.
            rice_sum = jnp.sum(acc_rice[...])
            total_sum = jnp.sum(acc_total[...])
            rice_area = jnp.sum(acc_area[...])

            rice_loss = rice_sum / n_elem
            nonrice_loss = (total_sum - rice_sum) / n_elem   # total - rice

            nonrice_area = hw_total - rice_area
            lam_r = jnp.where(rice_area > eps, hw_total / (rice_area + eps), 0.0)
            lam_n = jnp.where(nonrice_area > eps, hw_total / (nonrice_area + eps), 0.0)
            lam_r = jnp.minimum(lam_r, max_weight)
            lam_n = jnp.minimum(lam_n, max_weight)
            wsum = lam_r + lam_n + eps

            loss_b = (lam_r * rice_loss + lam_n * nonrice_loss) / wsum
            # Lane-dense unmasked store of the per-sample scalar.
            out_ref[...] = jnp.full(out_ref.shape, loss_b, dtype=jnp.float32)

    return kernel


def adaptive_weighted_l1_loss(prediction, target, rice_mask,
                              eps=1e-6, max_weight=10.0):
    """Pallas TPU implementation of AdaptiveWeightedL1Loss.forward."""
    B, C, H, W = prediction.shape
    assert target.shape == prediction.shape
    assert rice_mask.shape == (B, 1, H, W)

    HW = H * W
    HWp = ((HW + 127) // 128) * 128

    pred = prediction.reshape(B, C, HW)
    tgt = target.reshape(B, C, HW)
    mask = rice_mask.reshape(B, 1, HW)
    if HWp != HW:
        # TODO(synk): this full-tensor pad costs an extra HBM round-trip; an
        # in-kernel ragged-lane mask on a 3-D layout would avoid it. The zero
        # padding itself is exact (|0-0| = 0 and mask = 0 add nothing).
        pad = [(0, 0), (0, 0), (0, HWp - HW)]
        pred = jnp.pad(pred, pad)
        tgt = jnp.pad(tgt, pad)
        mask = jnp.pad(mask, pad)

    n_rows = HWp // 128
    # Lane-dense 4-D layout: vreg-mapped dims are (rows, 128) regardless of C,
    # so sublanes are fully occupied even when C < 8. Reshape is metadata-only.
    pred = pred.reshape(B, C, n_rows, 128)
    tgt = tgt.reshape(B, C, n_rows, 128)
    mask = mask.reshape(B, 1, n_rows, 128)

    itemsize = jnp.dtype(prediction.dtype).itemsize
    mask_itemsize = jnp.dtype(rice_mask.dtype).itemsize

    # ~2 MiB per pred/tgt tile (Pallas double-buffers) -> working set ~10 MiB,
    # comfortably under scoped-VMEM defaults on v5e (16 MiB) / v6e, v7x (32 MiB).
    tile_budget = 2 << 20
    target_rows = max(8, tile_budget // max(1, C * 128 * itemsize))
    if n_rows <= 8:
        rows_pb = n_rows                      # full row dim: no (8, .) constraint
    else:
        rows_pb = max(8, min((n_rows // 8) * 8, (target_rows // 8) * 8))
    n_chunks = (n_rows + rows_pb - 1) // rows_pb
    needs_row_mask = (n_rows % rows_pb) != 0

    kernel = _make_kernel(C, n_rows, rows_pb, needs_row_mask,
                          eps, max_weight, C * H * W, H * W)

    bytes_accessed = (2 * B * C * HWp * itemsize
                      + B * HWp * mask_itemsize
                      + B * 8 * 128 * 4)
    cost = pl.CostEstimate(flops=B * HWp * (3 * C + 4),
                           transcendentals=0,
                           bytes_accessed=bytes_accessed)

    per_sample = pl.pallas_call(
        kernel,
        out_shape=jax.ShapeDtypeStruct((B, 8, 128), jnp.float32),
        grid_spec=pltpu.PrefetchScalarGridSpec(
            num_scalar_prefetch=0,
            grid=(B, n_chunks),
            in_specs=[
                pl.BlockSpec((1, C, rows_pb, 128), lambda b, c: (b, 0, c, 0)),
                pl.BlockSpec((1, C, rows_pb, 128), lambda b, c: (b, 0, c, 0)),
                pl.BlockSpec((1, 1, rows_pb, 128), lambda b, c: (b, 0, c, 0)),
            ],
            out_specs=pl.BlockSpec((1, 8, 128), lambda b, c: (b, 0, 0)),
            scratch_shapes=[
                pltpu.VMEM((rows_pb, 128), jnp.float32),   # rice partial sums
                pltpu.VMEM((rows_pb, 128), jnp.float32),   # total partial sums
                pltpu.VMEM((rows_pb, 128), jnp.float32),   # rice-area partials
            ],
        ),
        compiler_params=pltpu.CompilerParams(
            # batch axis parallel (megacore / v7x dual-TC), chunk axis serial
            dimension_semantics=("parallel", "arbitrary"),
            vmem_limit_bytes=32 * 1024 * 1024,
        ),
        cost_estimate=cost,
    )(pred, tgt, mask)

    # Final mean over the batch in plain JAX (keeps the batch axis race-free).
    return jnp.mean(per_sample[:, 0, 0])


def _reference(prediction, target, rice_mask, eps=1e-6, max_weight=10.0):
    """Pure-JAX reference mirroring the PyTorch module."""
    prediction = prediction.astype(jnp.float32)
    target = target.astype(jnp.float32)
    rice_mask = rice_mask.astype(jnp.float32)
    abs_error = jnp.abs(prediction - target)

    nonrice_mask = 1.0 - rice_mask
    rice_area = rice_mask.sum(axis=(1, 2, 3))
    nonrice_area = nonrice_mask.sum(axis=(1, 2, 3))
    total_area = rice_area + nonrice_area
    lambda_rice = total_area / (rice_area + eps)
    lambda_nonrice = total_area / (nonrice_area + eps)
    lambda_rice = jnp.where(rice_area > eps, lambda_rice, 0.0)
    lambda_nonrice = jnp.where(nonrice_area > eps, lambda_nonrice, 0.0)
    lambda_rice = jnp.minimum(lambda_rice, max_weight)
    lambda_nonrice = jnp.minimum(lambda_nonrice, max_weight)
    weight_sum = lambda_rice + lambda_nonrice + eps
    lambda_rice = lambda_rice / weight_sum
    lambda_nonrice = lambda_nonrice / weight_sum

    rice_loss = (abs_error * rice_mask).mean(axis=(1, 2, 3))
    nonrice_loss = (abs_error * (1.0 - rice_mask)).mean(axis=(1, 2, 3))
    total_loss = lambda_rice * rice_loss + lambda_nonrice * nonrice_loss
    return total_loss.mean()


if __name__ == "__main__":
    # Small deterministic inputs (module has no learned parameters).
    B, C, H, W = 2, 4, 16, 16
    key = jax.random.PRNGKey(0)
    k1, k2, k3 = jax.random.split(key, 3)

    prediction = jax.random.normal(k1, (B, C, H, W), dtype=jnp.float32)
    target = jax.random.normal(k2, (B, C, H, W), dtype=jnp.float32)
    rice_mask = jax.random.bernoulli(k3, p=0.3, shape=(B, 1, H, W)).astype(jnp.float32)

    loss = adaptive_weighted_l1_loss(prediction, target, rice_mask)
    loss = jax.block_until_ready(loss)

    ref = _reference(prediction, target, rice_mask)
    assert jnp.allclose(loss, ref, rtol=1e-4, atol=1e-5), (loss, ref)

    print("KERNEL_OK")
</pallas_src>

<mosaic_0001>
module attributes {stable_mosaic.version = 11 : i64} {
  func.func @kernel(%arg0: i32, %arg1: i32, %arg2: memref<1x4x2x128xf32, #tpu.memory_space<vmem>>, %arg3: memref<1x4x2x128xf32, #tpu.memory_space<vmem>>, %arg4: memref<1x1x2x128xf32, #tpu.memory_space<vmem>>, %arg5: memref<1x8x128xf32, #tpu.memory_space<vmem>>, %arg6: memref<2x128xf32, #tpu.memory_space<vmem>>, %arg7: memref<2x128xf32, #tpu.memory_space<vmem>>, %arg8: memref<2x128xf32, #tpu.memory_space<vmem>>) attributes {dimension_semantics = [#tpu.dimension_semantics<parallel>, #tpu.dimension_semantics<arbitrary>], iteration_bounds = array<i64: 2, 1>, scalar_prefetch = 0 : i64, scratch_operands = 3 : i64, tpu.core_type = #tpu.core_type<tc>, window_params = [{transform_indices = @transform_0, window_bounds = array<i64: 1, 4, 2, 128>}, {transform_indices = @transform_1, window_bounds = array<i64: 1, 4, 2, 128>}, {transform_indices = @transform_2, window_bounds = array<i64: 1, 1, 2, 128>}, {transform_indices = @transform_3, window_bounds = array<i64: 1, 8, 128>}]} {
    %c0_i32 = arith.constant 0 : i32
    %0 = arith.cmpi eq, %arg1, %c0_i32 : i32
    %1 = arith.extui %0 : i1 to i32
    %c0_i32_0 = arith.constant 0 : i32
    %2 = arith.cmpi ne, %1, %c0_i32_0 : i32
    scf.if %2 {
      %cst_26 = arith.constant 0.000000e+00 : f32
      %23 = vector.broadcast %cst_26 : f32 to vector<2x128xf32>
      %c0_27 = arith.constant 0 : index
      %c0_28 = arith.constant 0 : index
      %24 = vector.load %arg6[%c0_27, %c0_28] : memref<2x128xf32, #tpu.memory_space<vmem>>, vector<2x128xf32>
      tpu.vector_store %arg6[%c0_27, %c0_28], %23 {strides = array<i32>} : memref<2x128xf32, #tpu.memory_space<vmem>>, vector<2x128xf32>,
      %cst_29 = arith.constant 0.000000e+00 : f32
      %25 = vector.broadcast %cst_29 : f32 to vector<2x128xf32>
      %c0_30 = arith.constant 0 : index
      %c0_31 = arith.constant 0 : index
      %26 = vector.load %arg7[%c0_30, %c0_31] : memref<2x128xf32, #tpu.memory_space<vmem>>, vector<2x128xf32>
      tpu.vector_store %arg7[%c0_30, %c0_31], %25 {strides = array<i32>} : memref<2x128xf32, #tpu.memory_space<vmem>>, vector<2x128xf32>,
      %cst_32 = arith.constant 0.000000e+00 : f32
      %27 = vector.broadcast %cst_32 : f32 to vector<2x128xf32>
      %c0_33 = arith.constant 0 : index
      %c0_34 = arith.constant 0 : index
      %28 = vector.load %arg8[%c0_33, %c0_34] : memref<2x128xf32, #tpu.memory_space<vmem>>, vector<2x128xf32>
      tpu.vector_store %arg8[%c0_33, %c0_34], %27 {strides = array<i32>} : memref<2x128xf32, #tpu.memory_space<vmem>>, vector<2x128xf32>,
    } else {
    }
    %c0 = arith.constant 0 : index
    %c0_1 = arith.constant 0 : index
    %c0_2 = arith.constant 0 : index
    %c0_3 = arith.constant 0 : index
    %3 = vector.load %arg2[%c0, %c0_1, %c0_2, %c0_3] : memref<1x4x2x128xf32, #tpu.memory_space<vmem>>, vector<1x4x2x128xf32>
    %c0_4 = arith.constant 0 : index
    %c0_5 = arith.constant 0 : index
    %c0_6 = arith.constant 0 : index
    %c0_7 = arith.constant 0 : index
    %4 = vector.load %arg3[%c0_4, %c0_5, %c0_6, %c0_7] : memref<1x4x2x128xf32, #tpu.memory_space<vmem>>, vector<1x4x2x128xf32>
    %5 = arith.subf %3, %4 : vector<1x4x2x128xf32>
    %6 = math.absf %5 : vector<1x4x2x128xf32>
    %cst = arith.constant dense<0.000000e+00> : vector<2x128xf32>
    %7 = vector.multi_reduction <add>, %6, %cst [0, 1] : vector<1x4x2x128xf32> to vector<2x128xf32>
    %c0_8 = arith.constant 0 : index
    %c0_9 = arith.constant 0 : index
    %c0_10 = arith.constant 0 : index
    %c0_11 = arith.constant 0 : index
    %8 = vector.load %arg4[%c0_8, %c0_9, %c0_10, %c0_11] : memref<1x1x2x128xf32, #tpu.memory_space<vmem>>, vector<1x1x2x128xf32>
    %9 = vector.shape_cast %8 : vector<1x1x2x128xf32> to vector<2x128xf32>
    %c0_12 = arith.constant 0 : index
    %c0_13 = arith.constant 0 : index
    %10 = vector.load %arg6[%c0_12, %c0_13] : memref<2x128xf32, #tpu.memory_space<vmem>>, vector<2x128xf32>
    %11 = arith.mulf %7, %9 : vector<2x128xf32>
    %12 = arith.addf %10, %11 : vector<2x128xf32>
    %c0_14 = arith.constant 0 : index
    %c0_15 = arith.constant 0 : index
    %13 = vector.load %arg6[%c0_14, %c0_15] : memref<2x128xf32, #tpu.memory_space<vmem>>, vector<2x128xf32>
    tpu.vector_store %arg6[%c0_14, %c0_15], %12 {strides = array<i32>} : memref<2x128xf32, #tpu.memory_space<vmem>>, vector<2x128xf32>,
    %c0_16 = arith.constant 0 : index
    %c0_17 = arith.constant 0 : index
    %14 = vector.load %arg7[%c0_16, %c0_17] : memref<2x128xf32, #tpu.memory_space<vmem>>, vector<2x128xf32>
    %15 = arith.addf %14, %7 : vector<2x128xf32>
    %c0_18 = arith.constant 0 : index
    %c0_19 = arith.constant 0 : index
    %16 = vector.load %arg7[%c0_18, %c0_19] : memref<2x128xf32, #tpu.memory_space<vmem>>, vector<2x128xf32>
    tpu.vector_store %arg7[%c0_18, %c0_19], %15 {strides = array<i32>} : memref<2x128xf32, #tpu.memory_space<vmem>>, vector<2x128xf32>,
    %c0_20 = arith.constant 0 : index
    %c0_21 = arith.constant 0 : index
    %17 = vector.load %arg8[%c0_20, %c0_21] : memref<2x128xf32, #tpu.memory_space<vmem>>, vector<2x128xf32>
    %18 = arith.addf %17, %9 : vector<2x128xf32>
    %c0_22 = arith.constant 0 : index
    %c0_23 = arith.constant 0 : index
    %19 = vector.load %arg8[%c0_22, %c0_23] : memref<2x128xf32, #tpu.memory_space<vmem>>, vector<2x128xf32>
    tpu.vector_store %arg8[%c0_22, %c0_23], %18 {strides = array<i32>} : memref<2x128xf32, #tpu.memory_space<vmem>>, vector<2x128xf32>,
    %c0_i32_24 = arith.constant 0 : i32
    %20 = arith.cmpi eq, %arg1, %c0_i32_24 : i32
    %21 = arith.extui %20 : i1 to i32
    %c0_i32_25 = arith.constant 0 : i32
    %22 = arith.cmpi ne, %21, %c0_i32_25 : i32
    scf.if %22 {
      %c0_26 = arith.constant 0 : index
      %c0_27 = arith.constant 0 : index
      %23 = vector.load %arg6[%c0_26, %c0_27] : memref<2x128xf32, #tpu.memory_space<vmem>>, vector<2x128xf32>
      %24 = vector.shape_cast %23 : vector<2x128xf32> to vector<1x2x128xf32>
      %cst_28 = arith.constant dense<0.000000e+00> : vector<1xf32>
      %25 = vector.multi_reduction <add>, %24, %cst_28 [1, 2] : vector<1x2x128xf32> to vector<1xf32>
      %26 = vector.shape_cast %25 : vector<1xf32> to vector<1x1x1xf32>
      %27 = vector.extract %26[0, 0, 0] : f32 from vector<1x1x1xf32>
      %c0_29 = arith.constant 0 : index
      %c0_30 = arith.constant 0 : index
      %28 = vector.load %arg7[%c0_29, %c0_30] : memref<2x128xf32, #tpu.memory_space<vmem>>, vector<2x128xf32>
      %29 = vector.shape_cast %28 : vector<2x128xf32> to vector<1x2x128xf32>
      %cst_31 = arith.constant dense<0.000000e+00> : vector<1xf32>
      %30 = vector.multi_reduction <add>, %29, %cst_31 [1, 2] : vector<1x2x128xf32> to vector<1xf32>
      %31 = vector.shape_cast %30 : vector<1xf32> to vector<1x1x1xf32>
      %32 = vector.extract %31[0, 0, 0] : f32 from vector<1x1x1xf32>
      %c0_32 = arith.constant 0 : index
      %c0_33 = arith.constant 0 : index
      %33 = vector.load %arg8[%c0_32, %c0_33] : memref<2x128xf32, #tpu.memory_space<vmem>>, vector<2x128xf32>
      %34 = vector.shape_cast %33 : vector<2x128xf32> to vector<1x2x128xf32>
      %cst_34 = arith.constant dense<0.000000e+00> : vector<1xf32>
      %35 = vector.multi_reduction <add>, %34, %cst_34 [1, 2] : vector<1x2x128xf32> to vector<1xf32>
      %36 = vector.shape_cast %35 : vector<1xf32> to vector<1x1x1xf32>
      %37 = vector.extract %36[0, 0, 0] : f32 from vector<1x1x1xf32>
      %cst_35 = arith.constant 1.024000e+03 : f32
      %38 = arith.divf %27, %cst_35 : f32
      %39 = arith.subf %32, %27 : f32
      %cst_36 = arith.constant 1.024000e+03 : f32
      %40 = arith.divf %39, %cst_36 : f32
      %cst_37 = arith.constant 2.560000e+02 : f32
      %41 = arith.subf %cst_37, %37 : f32
      %cst_38 = arith.constant 9.99999997E-7 : f32
      %42 = arith.cmpf ogt, %37, %cst_38 : f32
      %cst_39 = arith.constant 9.99999997E-7 : f32
      %43 = arith.addf %37, %cst_39 : f32
      %cst_40 = arith.constant 2.560000e+02 : f32
      %44 = arith.divf %cst_40, %43 : f32
      %cst_41 = arith.constant 0.000000e+00 : f32
      %45 = arith.select %42, %44, %cst_41 : f32
      %cst_42 = arith.constant 9.99999997E-7 : f32
      %46 = arith.cmpf ogt, %41, %cst_42 : f32
      %cst_43 = arith.constant 9.99999997E-7 : f32
      %47 = arith.addf %41, %cst_43 : f32
      %cst_44 = arith.constant 2.560000e+02 : f32
      %48 = arith.divf %cst_44, %47 : f32
      %cst_45 = arith.constant 0.000000e+00 : f32
      %49 = arith.select %46, %48, %cst_45 : f32
      %cst_46 = arith.constant 1.000000e+01 : f32
      %50 = arith.minimumf %45, %cst_46 : f32
      %cst_47 = arith.constant 1.000000e+01 : f32
      %51 = arith.minimumf %49, %cst_47 : f32
      %52 = arith.addf %50, %51 : f32
      %cst_48 = arith.constant 9.99999997E-7 : f32
      %53 = arith.addf %52, %cst_48 : f32
      %54 = arith.mulf %50, %38 : f32
      %55 = arith.mulf %51, %40 : f32
      %56 = arith.addf %54, %55 : f32
      %57 = arith.divf %56, %53 : f32
      %58 = vector.broadcast %57 : f32 to vector<1x8x128xf32>
      %c0_49 = arith.constant 0 : index
      %c0_50 = arith.constant 0 : index
      %c0_51 = arith.constant 0 : index
      %59 = vector.load %arg5[%c0_49, %c0_50, %c0_51] : memref<1x8x128xf32, #tpu.memory_space<vmem>>, vector<1x8x128xf32>
      tpu.vector_store %arg5[%c0_49, %c0_50, %c0_51], %58 {strides = array<i32>} : memref<1x8x128xf32, #tpu.memory_space<vmem>>, vector<1x8x128xf32>,
    } else {
    }
    return
  }
  func.func @transform_0(%arg0: i32, %arg1: i32) -> (i32, i32, i32, i32) {
    %c0_i32 = arith.constant 0 : i32
    %c0_i32_0 = arith.constant 0 : i32
    %c0_i32_1 = arith.constant 0 : i32
    return %arg0, %c0_i32, %arg1, %c0_i32_0 : i32, i32, i32, i32
  }
  func.func @transform_1(%arg0: i32, %arg1: i32) -> (i32, i32, i32, i32) {
    %c0_i32 = arith.constant 0 : i32
    %c0_i32_0 = arith.constant 0 : i32
    %c0_i32_1 = arith.constant 0 : i32
    return %arg0, %c0_i32, %arg1, %c0_i32_0 : i32, i32, i32, i32
  }
  func.func @transform_2(%arg0: i32, %arg1: i32) -> (i32, i32, i32, i32) {
    %c0_i32 = arith.constant 0 : i32
    %c0_i32_0 = arith.constant 0 : i32
    %c0_i32_1 = arith.constant 0 : i32
    return %arg0, %c0_i32, %arg1, %c0_i32_0 : i32, i32, i32, i32
  }
  func.func @transform_3(%arg0: i32, %arg1: i32) -> (i32, i32, i32) {
    %c0_i32 = arith.constant 0 : i32
    %c0_i32_0 = arith.constant 0 : i32
    %c0_i32_1 = arith.constant 0 : i32
    return %arg0, %c0_i32, %c0_i32_0 : i32, i32, i32
  }
}

</mosaic_0001>

<llo_original>
// kernel: tpu_custom_call.1
$region0: #{tpu_custom_call.1}
  #allocation0 [shape = 'u32[]', space=smem, size = 0x4, offset = 0x4, fixed_abs, tag = 'smem constant byte address 0x4 - core index']
  #allocation1 [shape = 'u32[144,128]{1,0:T(1,128)}', space=vmem, size = 0x12000, scoped, tag = 'internal scratch']
  #allocation2 [shape = 'f32[2,128]{1,0:T(2,128)}', space=vmem, size = 0x400, scoped, tag = 'scratch operand']
  #allocation3 [shape = 'f32[2,128]{1,0:T(2,128)}', space=vmem, size = 0x400, scoped, tag = 'scratch operand']
  #allocation4 [shape = 'f32[2,128]{1,0:T(2,128)}', space=vmem, size = 0x400, scoped, tag = 'scratch operand']
  %s0 = inlined_call_operand.hbm [shape: f32[2,4,2,128], index: 0, kind: input, shape index: {}]
  %s1 = inlined_call_operand.hbm [shape: f32[2,4,2,128], index: 1, kind: input, shape index: {}]
  %s2 = inlined_call_operand.vmem [shape: f32[2,1,2,128], index: 2, kind: input, shape index: {}]
  %s3 = inlined_call_operand.hbm [shape: f32[2,8,128], index: 3, kind: output, shape index: {}]
  %s4 = sld [smem:[#allocation0]]
  $region61: #{tpu_custom_call.1} parent=0
    _
  %s6 = ssub.s32 1, %s4
  %s7 = scalar_select 0, %s6, %s4
  $region1: #{tpu_custom_call.1} parent=0
    #allocation5 [shape = 'u8[8192]{0}', space=vmem, size = 0x2000, scoped, tag = 'input window, operand 0']
    #allocation6 [shape = 's32[2]{0}', space=sflag, size = 0x8, scoped, tag = 'scoped memory for tpu_custom_call.1']
    #allocation7 [shape = 's32[2]{0}', space=sflag, size = 0x8, scoped, tag = 'scoped memory for tpu_custom_call.1']
    #allocation8 [shape = 'u8[8192]{0}', space=vmem, size = 0x2000, scoped, tag = 'input window, operand 1']
    #allocation9 [shape = 's32[2]{0}', space=sflag, size = 0x8, scoped, tag = 'scoped memory for tpu_custom_call.1']
    #allocation10 [shape = 'u8[8192]{0}', space=vmem, size = 0x2000, scoped, tag = 'output window, operand 0']
    %8 = vsyncpa [#allocation6], 0
    %s9 = scalar_lea.sflag [#allocation6], 1
    %10 = vsyncpa %s9, 0
    %11 = vsyncpa [#allocation9], 0
    %s12 = scalar_lea.sflag [#allocation9], 1
    %13 = vsyncpa %s12, 0
    %14 = vsyncpa [#allocation7], 0
    %s15 = scalar_lea.sflag [#allocation7], 1
    %16 = vsyncpa %s15, 0
    loop: start=0, step=1, limit=4
    $region2: #{tpu_custom_call.1} parent=1 // loop_pre_header
      _
    $region3: #{tpu_custom_call.1} parent=1 // loop_header
      %s18 = sphi 0, %s22
      %p19 = scmp.ge.s32.totalorder %s18, 4
      %s25 = sphi 0, %s37
      %s26 = sphi 0, %s33
      %s27 = sphi 0, %s25
      %s28 = sphi 0, %s26
      %s29 = sphi 0, %s27
      %s30 = sphi 0, %s28
      %s42 = sphi 0, %s44
      %s45 = sphi 0, %s42
      %s46 = sphi 0, %s45
      %s62 = sphi 0, %s46
      %s70 = sphi 0, %s72
      %s73 = sphi 0, %s70
      %s74 = sphi 0, %s73
      %s90 = sphi 0, %s74
      %s98 = sphi 0, %s100
      %s101 = sphi 0, %s98
      %s102 = sphi 0, %s101
      %s118 = sphi 0, %s102
      %s124 = sphi 0, %s126
      %s127 = sphi 0, %s124
      %s128 = sphi 0, %s127
      %s144 = sphi 0, %s128
    $region4: #{tpu_custom_call.1} parent=1 // loop_header_branch
      %21 = sbr.rel (%p19) target = $region8
    $region5: #{tpu_custom_call.1} parent=1 // loop_body
      %s23 = ssub.s32 %s18, 1
      %s24 = ssub.s32 %s18, 2
      %s31 = sadd.s32 1, %s26
      %p32 = scmp.ge.s32.totalorder %s31, 1
      %s33 = scalar_select %p32, 0, %s31
      %s34 = sadd.s32 1, %s25
      %s35 = scalar_select %p32, %s34, %s25
      %p36 = scmp.ge.s32.totalorder %s35, 2
      %s37 = scalar_select %p36, 0, %s35
      %s38 = ssub.s32 %s25, %s37
      %s39 = ssub.s32 %s26, %s33
      %s40 = sor.u32 %s38, %s39
      %p41 = scmp.eq.s32.totalorder %s40, 0
      %s43 = sadd.s32 %s42, 1
      %s44 = scalar_select %p41, %s42, %s43
      %p47 = pneg %p41
      %p48 = scmp.eq.s32.totalorder %s18, 1
      %p49 = por %p47, %p48
      %p50 = scmp.ne.s32.totalorder %s42, %s45
      %p51 = scmp.eq.s32.totalorder %s18, 0
      %p52 = por %p50, %p51
      %p53 = scmp.ne.s32.totalorder %s42, %s45
      %p54 = scmp.eq.s32.totalorder %s23, 1
      %p55 = por %p53, %p54
      %p56 = scmp.ne.s32.totalorder %s45, %s46
      %p57 = scmp.eq.s32.totalorder %s23, 0
      %p58 = por %p56, %p57
      %p59 = scmp.ne.s32.totalorder %s45, %s46
      %p60 = scmp.eq.s32.totalorder %s24, 1
      %p61 = por %p59, %p60
      %p63 = scmp.ne.s32.totalorder %s46, %s62
      %p64 = scmp.eq.s32.totalorder %s24, 0
      %p65 = por %p63, %p64
      %s66 = ssub.s32 %s25, %s37
      %s67 = ssub.s32 %s26, %s33
      %s68 = sor.u32 %s66, %s67
      %p69 = scmp.eq.s32.totalorder %s68, 0
      %s71 = sadd.s32 %s70, 1
      %s72 = scalar_select %p69, %s70, %s71
      %p75 = pneg %p69
      %p76 = scmp.eq.s32.totalorder %s18, 1
      %p77 = por %p75, %p76
      %p78 = scmp.ne.s32.totalorder %s70, %s73
      %p79 = scmp.eq.s32.totalorder %s18, 0
      %p80 = por %p78, %p79
      %p81 = scmp.ne.s32.totalorder %s70, %s73
      %p82 = scmp.eq.s32.totalorder %s23, 1
      %p83 = por %p81, %p82
      %p84 = scmp.ne.s32.totalorder %s73, %s74
      %p85 = scmp.eq.s32.totalorder %s23, 0
      %p86 = por %p84, %p85
      %p87 = scmp.ne.s32.totalorder %s73, %s74
      %p88 = scmp.eq.s32.totalorder %s24, 1
      %p89 = por %p87, %p88
      %p91 = scmp.ne.s32.totalorder %s74, %s90
      %p92 = scmp.eq.s32.totalorder %s24, 0
      %p93 = por %p91, %p92
      %s94 = ssub.s32 %s25, %s37
      %s95 = ssub.s32 %s26, %s33
      %s96 = sor.u32 %s94, %s95
      %p97 = scmp.eq.s32.totalorder %s96, 0
      %s99 = sadd.s32 %s98, 1
      %s100 = scalar_select %p97, %s98, %s99
      %p103 = pneg %p97
      %p104 = scmp.eq.s32.totalorder %s18, 1
      %p105 = por %p103, %p104
      %p106 = scmp.ne.s32.totalorder %s98, %s101
      %p107 = scmp.eq.s32.totalorder %s18, 0
      %p108 = por %p106, %p107
      %p109 = scmp.ne.s32.totalorder %s98, %s101
      %p110 = scmp.eq.s32.totalorder %s23, 1
      %p111 = por %p109, %p110
      %p112 = scmp.ne.s32.totalorder %s101, %s102
      %p113 = scmp.eq.s32.totalorder %s23, 0
      %p114 = por %p112, %p113
      %p115 = scmp.ne.s32.totalorder %s101, %s102
      %p116 = scmp.eq.s32.totalorder %s24, 1
      %p117 = por %p115, %p116
      %p119 = scmp.ne.s32.totalorder %s102, %s118
      %p120 = scmp.eq.s32.totalorder %s24, 0
      %p121 = por %p119, %p120
      %s122 = ssub.s32 %s25, %s37
      %p123 = scmp.eq.s32.totalorder %s122, 0
      %s125 = sadd.s32 %s124, 1
      %s126 = scalar_select %p123, %s124, %s125
      %p129 = pneg %p123
      %p130 = scmp.eq.s32.totalorder %s18, 1
      %p131 = por %p129, %p130
      %p132 = scmp.ne.s32.totalorder %s124, %s127
      %p133 = scmp.eq.s32.totalorder %s18, 0
      %p134 = por %p132, %p133
      %p135 = scmp.ne.s32.totalorder %s124, %s127
      %p136 = scmp.eq.s32.totalorder %s23, 1
      %p137 = por %p135, %p136
      %p138 = scmp.ne.s32.totalorder %s127, %s128
      %p139 = scmp.eq.s32.totalorder %s23, 0
      %p140 = por %p138, %p139
      %p141 = scmp.ne.s32.totalorder %s127, %s128
      %p142 = scmp.eq.s32.totalorder %s24, 1
      %p143 = por %p141, %p142
      %p145 = scmp.ne.s32.totalorder %s128, %s144
      %p146 = scmp.eq.s32.totalorder %s24, 0
      %p147 = por %p145, %p146
      %p148 = scmp.le.s32.totalorder 1, %s18
      %p149 = scmp.lt.s32.totalorder %s18, 3
      %p150 = pnand %p148, %p149
      %p151 = pneg %p150
      // Predicated region
      $region9: #{tpu_custom_call.1} parent=5 // pred_check
        _
      $region10: #{tpu_custom_call.1} parent=5 // pred_check_branch
        %153 = sbr.rel (%p150) target = $region12
      $region11: #{tpu_custom_call.1} parent=5 // pred_region
        %s154 = ssub.s32 %s18, 1
      $region12: #{tpu_custom_call.1} parent=5 // pred_fallthru
        _
      %p155 = scmp.lt.s32.totalorder %s18, 2
      // Predicated region
      $region13: #{tpu_custom_call.1} parent=5 // pred_check
        %p156 = pneg %p155
      $region14: #{tpu_custom_call.1} parent=5 // pred_check_branch
        %158 = sbr.rel (%p156) target = $region16
      $region15: #{tpu_custom_call.1} parent=5 // pred_region
        // Predicated region
        $region17: #{tpu_custom_call.1} parent=15 // pred_check
          %p159 = pneg %p52
        $region18: #{tpu_custom_call.1} parent=15 // pred_check_branch
          %161 = sbr.rel (%p159) target = $region20
        $region19: #{tpu_custom_call.1} parent=15 // pred_region
          %s162 = sand.u32 %s42, 1
          %s163 = scalar_lea.sflag [#allocation6], %s162
          %s164 = sand.u32 %s42, 1
          %s165 = smul.addr %s164, 8
          %s166 = scalar_lea.vmem [#allocation5], %s165
          %s168 = ssub.s32 128, 128
          %169 = vsyncadd %s163, %s168
          %s170 = smul.addr %s25, 4
          %s171 = sadd.s32 %s26, %s170
          %s172 = smul.addr %s171, 32
          %s173 = scalar_lea.hbm %s0, %s172
          %s174 = sshll.u32 %s166, 4
          %s175 = int_to_ptr.vmem [resolvable:$true] %s174
          %180 = dma.hbm_to_vmem [thread:$0]  %s173, 128, %s175, %s163, 32, 32, 2
        $region20: #{tpu_custom_call.1} parent=15 // pred_fallthru
          _
        // Predicated region
        $region21: #{tpu_custom_call.1} parent=15 // pred_check
          %p181 = pneg %p80
        $region22: #{tpu_custom_call.1} parent=15 // pred_check_branch
          %183 = sbr.rel (%p181) target = $region24
        $region23: #{tpu_custom_call.1} parent=15 // pred_region
          %s184 = sand.u32 %s70, 1
          %s185 = scalar_lea.sflag [#allocation9], %s184
          %s186 = sand.u32 %s70, 1
          %s187 = smul.addr %s186, 8
          %s188 = scalar_lea.vmem [#allocation8], %s187
          %s190 = ssub.s32 128, 128
          %191 = vsyncadd %s185, %s190
          %s192 = smul.addr %s25, 4
          %s193 = sadd.s32 %s26, %s192
          %s194 = smul.addr %s193, 32
          %s195 = scalar_lea.hbm %s1, %s194
          %s196 = sshll.u32 %s188, 4
          %s197 = int_to_ptr.vmem [resolvable:$true] %s196
          %202 = dma.hbm_to_vmem [thread:$0]  %s195, 128, %s197, %s185, 32, 32, 2
        $region24: #{tpu_custom_call.1} parent=15 // pred_fallthru
          _
        // Predicated region
        $region25: #{tpu_custom_call.1} parent=15 // pred_check
          %p203 = pneg %p108
        $region26: #{tpu_custom_call.1} parent=15 // pred_check_branch
          %205 = sbr.rel (%p203) target = $region28
        $region27: #{tpu_custom_call.1} parent=15 // pred_region
          %p206 = scmp.lt.s32.totalorder %s25, 1
          %s207 = scalar_select %p206, %s25, 1
          %p208 = scmp.lt.s32.totalorder %s26, 0
          %s209 = scalar_select %p208, %s26, 0
          %s210 = sadd.s32 %s209, %s207
          %s211 = smul.addr %s210, 2
          %s212 = scalar_lea.vmem %s2, %s211
        $region28: #{tpu_custom_call.1} parent=15 // pred_fallthru
          _
      $region16: #{tpu_custom_call.1} parent=5 // pred_fallthru
        _
      %p213 = scmp.le.s32.totalorder 1, %s18
      %p214 = scmp.lt.s32.totalorder %s18, 3
      %p215 = pnand %p213, %p214
      %p216 = pneg %p215
      // Predicated region
      $region29: #{tpu_custom_call.1} parent=5 // pred_check
        _
      $region30: #{tpu_custom_call.1} parent=5 // pred_check_branch
        %218 = sbr.rel (%p215) target = $region32
      $region31: #{tpu_custom_call.1} parent=5 // pred_region
        %s219 = ssub.s32 %s18, 1
        %s220 = sand.u32 %s45, 1
        %s221 = scalar_lea.sflag [#allocation6], %s220
        %s222 = sand.u32 %s45, 1
        %s223 = smul.addr %s222, 8
        %s224 = scalar_lea.vmem [#allocation5], %s223
        // Predicated region
        $region33: #{tpu_custom_call.1} parent=31 // pred_check
          %p225 = pneg %p58
        $region34: #{tpu_custom_call.1} parent=31 // pred_check_branch
          %227 = sbr.rel (%p225) target = $region36
        $region35: #{tpu_custom_call.1} parent=31 // pred_region
          %228 = dma.done %s221, 128
        $region36: #{tpu_custom_call.1} parent=31 // pred_fallthru
          _
        %s229 = sand.u32 %s73, 1
        %s230 = scalar_lea.sflag [#allocation9], %s229
        %s231 = sand.u32 %s73, 1
        %s232 = smul.addr %s231, 8
        %s233 = scalar_lea.vmem [#allocation8], %s232
        // Predicated region
        $region37: #{tpu_custom_call.1} parent=31 // pred_check
          %p234 = pneg %p86
        $region38: #{tpu_custom_call.1} parent=31 // pred_check_branch
          %236 = sbr.rel (%p234) target = $region40
        $region39: #{tpu_custom_call.1} parent=31 // pred_region
          %237 = dma.done %s230, 128
        $region40: #{tpu_custom_call.1} parent=31 // pred_fallthru
          _
        %s238 = sand.u32 %s45, 1
        %s239 = scalar_lea.sflag [#allocation6], %s238
        %s240 = sand.u32 %s45, 1
        %s241 = smul.addr %s240, 8
        %s242 = scalar_lea.vmem [#allocation5], %s241
        %p243 = pneg %p58
        %p244 = pneg %p55
        %s245 = sand.u32 %s73, 1
        %s246 = scalar_lea.sflag [#allocation9], %s245
        %s247 = sand.u32 %s73, 1
        %s248 = smul.addr %s247, 8
        %s249 = scalar_lea.vmem [#allocation8], %s248
        %p250 = pneg %p86
        %p251 = pneg %p83
        %p252 = scmp.lt.s32.totalorder %s27, 1
        %s253 = scalar_select %p252, %s27, 1
        %p254 = scmp.lt.s32.totalorder %s28, 0
        %s255 = scalar_select %p254, %s28, 0
        %s256 = sadd.s32 %s255, %s253
        %s257 = smul.addr %s256, 2
        %s258 = scalar_lea.vmem %s2, %s257
        %p259 = pneg %p114
        %p260 = pneg %p111
        %p261 = pneg %p140
        %p262 = pneg %p137
        %s263 = sand.u32 %s127, 1
        %s264 = scalar_lea.sflag [#allocation7], %s263
        %s265 = sand.u32 %s127, 1
        %s266 = smul.addr %s265, 8
        %s267 = scalar_lea.vmem [#allocation10], %s266
        %p268 = scmp.lt.s32.totalorder %s27, 1
        %s269 = scalar_select %p268, %s27, 1
        %p270 = scmp.lt.s32.totalorder %s28, 0
        %s271 = scalar_select %p270, %s28, 0
        %s272 = sadd.s32 %s271, %s269
        %s273 = smul.addr %s272, 2
        %s274 = scalar_lea.vmem %s2, %s273
        %p275 = scmp.eq.s32.totalorder %s28, 0
        // Predicated region
        $region41: #{tpu_custom_call.1} parent=31 // pred_check
          %p276 = pneg %p275
        $region42: #{tpu_custom_call.1} parent=31 // pred_check_branch
          %278 = sbr.rel (%p276) target = $region44
        $region43: #{tpu_custom_call.1} parent=31 // pred_region
          %279 = vst [vmem:[#allocation2] sm:$0x3] 0.0
          %280 = vst [vmem:[#allocation3] sm:$0x3] 0.0
          %281 = vst [vmem:[#allocation4] sm:$0x3] 0.0
        $region44: #{tpu_custom_call.1} parent=31 // pred_fallthru
          _
        %v282 = vld [vmem:[%s224] sm:$0x3]
        %v283 = vld [vmem:[%s224 + $0x2] sm:$0x3]
        %v284 = vld [vmem:[%s224 + $0x4] sm:$0x3]
        %v285 = vld [vmem:[%s224 + $0x6] sm:$0x3]
        %v286 = vld [vmem:[%s233] sm:$0x3]
        %v287 = vld [vmem:[%s233 + $0x2] sm:$0x3]
        %v288 = vld [vmem:[%s233 + $0x4] sm:$0x3]
        %v289 = vld [vmem:[%s233 + $0x6] sm:$0x3]
        %v290 = vsub.f32 %v282, %v286
        %v291 = vsub.f32 %v283, %v287
        %v292 = vsub.f32 %v284, %v288
        %v293 = vsub.f32 %v285, %v289
        %v294 = vand.u32 2147483647, %v290
        %v295 = vand.u32 2147483647, %v291
        %v296 = vand.u32 2147483647, %v292
        %v297 = vand.u32 2147483647, %v293
        %vm298 = vcmask 1041408
        %v299 = vsel %vm298, %v294, 0.0
        %v300 = vsel %vm298, %v295, 0.0
        %v301 = vadd.f32 %v299, %v300
        %v302 = vsel %vm298, %v296, 0.0
        %v303 = vadd.f32 %v301, %v302
        %v304 = vsel %vm298, %v297, 0.0
        %v305 = vadd.f32 %v303, %v304
        %v306 = vld [vmem:[%s274] sm:$0x3]
        %v307 = vld [vmem:[#allocation2] sm:$0x3]
        %v308 = vmul.f32 %v305, %v306
        %v309 = vadd.f32 %v307, %v308
        %310 = vst [vmem:[#allocation2] sm:$0x3] %v309
        %v311 = vld [vmem:[#allocation3] sm:$0x3]
        %v312 = vadd.f32 %v311, %v305
        %313 = vst [vmem:[#allocation3] sm:$0x3] %v312
        %v314 = vld [vmem:[#allocation4] sm:$0x3]
        %v315 = vadd.f32 %v314, %v306
        %316 = vst [vmem:[#allocation4] sm:$0x3] %v315
        // Predicated region
        $region45: #{tpu_custom_call.1} parent=31 // pred_check
          %p317 = pneg %p275
        $region46: #{tpu_custom_call.1} parent=31 // pred_check_branch
          %319 = sbr.rel (%p317) target = $region48
        $region47: #{tpu_custom_call.1} parent=31 // pred_region
          %v320 = vld [vmem:[#allocation2] sm:$0x3]
          %v321 = vsel %vm298, %v320, 0.0
          %322 = vadd.xlane.f32.xlu0 %v321
          %v323 = vpop.xlane.xlu0 %322
          %v324 = vrot.slane %v323, 4
          %v325 = vadd.f32 %v323, %v324
          %v326 = vrot.slane %v325, 2
          %v327 = vadd.f32 %v325, %v326
          %v328 = vrot.slane %v327, 1
          %v329 = vadd.f32 %v327, %v328
          %s330 = vtos %v329
          %v331 = vld [vmem:[#allocation3] sm:$0x3]
          %v332 = vsel %vm298, %v331, 0.0
          %333 = vadd.xlane.f32.xlu0 %v332
          %v334 = vpop.xlane.xlu0 %333
          %v335 = vrot.slane %v334, 4
          %v336 = vadd.f32 %v334, %v335
          %v337 = vrot.slane %v336, 2
          %v338 = vadd.f32 %v336, %v337
          %v339 = vrot.slane %v338, 1
          %v340 = vadd.f32 %v338, %v339
          %s341 = vtos %v340
          %v342 = vld [vmem:[#allocation4] sm:$0x3]
          %v343 = vsel %vm298, %v342, 0.0
          %344 = vadd.xlane.f32.xlu0 %v343
          %v345 = vpop.xlane.xlu0 %344
          %v346 = vrot.slane %v345, 4
          %v347 = vadd.f32 %v345, %v346
          %v348 = vrot.slane %v347, 2
          %v349 = vadd.f32 %v347, %v348
          %v350 = vrot.slane %v349, 1
          %v351 = vadd.f32 %v349, %v350
          %s352 = vtos %v351
          %v353 = vrcp.pop 1024.0
          %s354 = vtos %v353
          %s355 = smul.f32 %s330, %s354
          %s356 = ssub.f32 %s341, %s330
          %v357 = vrcp.pop 1024.0
          %s358 = vtos %v357
          %s359 = smul.f32 %s356, %s358
          %s360 = ssub.f32 256.0, %s352
          %p361 = scmp.gt.f32.partialorder %s352, 1e-06
          %s362 = sadd.f32 %s352, 1e-06
          %v363 = vstv %s362
          %v364 = vrcp.pop %v363
          %s365 = vtos %v364
          %s366 = smul.f32 256.0, %s365
          %s367 = scalar_select %p361, %s366, 0.0
          %p368 = scmp.gt.f32.partialorder %s360, 1e-06
          %s369 = sadd.f32 %s360, 1e-06
          %v370 = vstv %s369
          %v371 = vrcp.pop %v370
          %s372 = vtos %v371
          %s373 = smul.f32 256.0, %s372
          %s374 = scalar_select %p368, %s373, 0.0
          %s375 = smin.f32 %s367, 10.0
          %s376 = smin.f32 %s374, 10.0
          %s377 = sadd.f32 %s375, %s376
          %s378 = sadd.f32 %s377, 1e-06
          %s379 = smul.f32 %s375, %s355
          %s380 = smul.f32 %s376, %s359
          %s381 = sadd.f32 %s379, %s380
          %v382 = vstv %s378
          %v383 = vrcp.pop %v382
          %s384 = vtos %v383
          %s385 = smul.f32 %s381, %s384
          %v386 = vstv %s385
          %387 = vst [vmem:[%s267] sm:$0xff] %v386
        $region48: #{tpu_custom_call.1} parent=31 // pred_fallthru
          _
        %s388 = sand.u32 %s127, 1
        %s389 = scalar_lea.sflag [#allocation7], %s388
        %s390 = sand.u32 %s127, 1
        %s391 = smul.addr %s390, 8
        %s392 = scalar_lea.vmem [#allocation10], %s391
        // Predicated region
        $region49: #{tpu_custom_call.1} parent=31 // pred_check
          %p393 = pneg %p137
        $region50: #{tpu_custom_call.1} parent=31 // pred_check_branch
          %395 = sbr.rel (%p393) target = $region52
        $region51: #{tpu_custom_call.1} parent=31 // pred_region
          %s397 = ssub.s32 128, 128
          %398 = vsyncadd %s389, %s397
          %s399 = smul.addr %s27, 128
          %s400 = scalar_lea.hbm %s3, %s399
          %s402 = sshll.u32 %s392, 4
          %s403 = int_to_ptr.vmem [resolvable:$true] %s402
          %405 = dma.vmem_to_hbm [thread:$0]  %s403, 128, %s400, %s389
        $region52: #{tpu_custom_call.1} parent=31 // pred_fallthru
          _
      $region32: #{tpu_custom_call.1} parent=5 // pred_fallthru
        _
      %p406 = scmp.le.s32.totalorder 2, %s18
      // Predicated region
      $region53: #{tpu_custom_call.1} parent=5 // pred_check
        %p407 = pneg %p406
      $region54: #{tpu_custom_call.1} parent=5 // pred_check_branch
        %409 = sbr.rel (%p407) target = $region56
      $region55: #{tpu_custom_call.1} parent=5 // pred_region
        %s410 = ssub.s32 %s18, 2
        // Predicated region
        $region57: #{tpu_custom_call.1} parent=55 // pred_check
          %p411 = pneg %p143
        $region58: #{tpu_custom_call.1} parent=55 // pred_check_branch
          %413 = sbr.rel (%p411) target = $region60
        $region59: #{tpu_custom_call.1} parent=55 // pred_region
          %s414 = sand.u32 %s128, 1
          %s415 = scalar_lea.sflag [#allocation7], %s414
          %s416 = sand.u32 %s128, 1
          %s417 = smul.addr %s416, 8
          %s418 = scalar_lea.vmem [#allocation10], %s417
          %419 = dma.done %s415, 128
        $region60: #{tpu_custom_call.1} parent=55 // pred_fallthru
          _
      $region56: #{tpu_custom_call.1} parent=5 // pred_fallthru
        _
    $region6: #{tpu_custom_call.1} parent=1 // loop_footer
      %s22 = sadd.s32 1, %s18
    $region7: #{tpu_custom_call.1} parent=1 // loop_footer_branch
      %17 = sbr.rel target = $region3
    $region8: #{tpu_custom_call.1} parent=1 // loop_exit
      _
    %420 = vsyncpa [#allocation6], 1
    %s421 = scalar_lea.sflag [#allocation6], 1
    %422 = vsyncpa %s421, 1
    %423 = vsyncpa [#allocation9], 1
    %s424 = scalar_lea.sflag [#allocation9], 1
    %425 = vsyncpa %s424, 1
    %426 = vsyncpa [#allocation7], 1
    %s427 = scalar_lea.sflag [#allocation7], 1
    %428 = vsyncpa %s427, 1

</llo_original>
